<compile_context>
chip_gen: v7x
topology: tpu7x:2x2x1
jax: 0.10.0
libtpu: 0.0.40
codegen_flags: <defaults>
</compile_context>

<pallas_src>
import math

import jax
import jax.numpy as jnp
import numpy as np
from jax.experimental import pallas as pl
from jax.experimental.pallas import tpu as pltpu


def _round_up(x, m):
    return ((x + m - 1) // m) * m


def _gather_kernel(ids_ref, pe_ref, emb_ref, out_ref):
    """One grid step = one (batch, seq-tile): TS token rows of one batch element.

    ids_ref : VMEM (TS, 1) int32   token ids for this tile
    pe_ref  : VMEM (TS, D) f32     sinusoidal PE rows for these positions
    emb_ref : VMEM (Vp, D)         whole embedding table (single resident copy)
    out_ref : VMEM (TS, D)         output tile
    """
    idx = ids_ref[:, 0]                                   # (TS,) int32
    rows = jnp.take(emb_ref[...], idx, axis=0)            # XLU dynamic row gather
    # Single fused, lane-dense store: gather + position encoding (add in f32).
    out_ref[...] = (rows.astype(jnp.float32) + pe_ref[...]).astype(out_ref.dtype)


def _onehot_kernel(ids_ref, pe_ref, emb_ref, out_ref):
    """Fallback only: one-hot MXU gather for Mosaic builds without dynamic gather."""
    ts = out_ref.shape[0]
    vp = emb_ref.shape[0]
    ids = ids_ref[...]                                            # (TS, 1) int32
    col = jax.lax.broadcasted_iota(jnp.int32, (ts, vp), 1)        # vocab index per lane
    onehot = (col == ids).astype(emb_ref.dtype)                   # (TS, Vp) exact 0/1
    rows = jnp.dot(onehot, emb_ref[...], preferred_element_type=jnp.float32)
    out_ref[...] = (rows + pe_ref[...]).astype(out_ref.dtype)


def token_and_position_embedding(ids, emb_table, max_wavelength=10000.0, seq_tile=None):
    """ids: (B, S) int ; emb_table: (V, D) -> (B, S, D) in emb_table.dtype."""
    B, S = ids.shape
    V, D = emb_table.shape
    dtype = emb_table.dtype
    itemsize = jnp.dtype(dtype).itemsize

    # ---- 2-D grid (batch, seq tiles); large seq tile amortizes ~0.35us/step ----
    if seq_tile is None:
        seq_tile = 512 if D <= 256 else 256
    TS = min(seq_tile, _round_up(S, 8))
    S_pad = _round_up(S, TS)

    # ---- vocab padded only to a sublane multiple (no lane-dense one-hot anymore).
    # TODO(synk): hoist this pad (and the PE below) to parameter-init time; both are
    # per-call overhead around an otherwise memory-bound kernel.
    Vp = _round_up(V, 8)
    emb_pad = emb_table if Vp == V else jnp.pad(emb_table, ((0, Vp - V), (0, 0)))

    # ---- token ids: clamp into range (PyTorch nn.Embedding raises on OOB ids; here
    # they read the last row instead), pad seq, add trailing unit lane dim ----
    ids_i32 = jnp.clip(ids.astype(jnp.int32), 0, V - 1)
    if S_pad != S:
        ids_i32 = jnp.pad(ids_i32, ((0, 0), (0, S_pad - S)))
    ids_col = ids_i32[:, :, None]                                  # (B, S_pad, 1)

    # ---- sinusoidal PE computed once as (S_pad, D) f32 (NOT tiled over batch) ----
    position = jnp.arange(S_pad, dtype=jnp.float32)[:, None]
    div_term = jnp.exp(
        jnp.arange(0, D, 2, dtype=jnp.float32) * (-math.log(max_wavelength) / D)
    )
    angles = position * div_term                                   # (S_pad, ceil(D/2))
    pe = jnp.zeros((S_pad, D), dtype=jnp.float32)
    pe = pe.at[:, 0::2].set(jnp.sin(angles))
    pe = pe.at[:, 1::2].set(jnp.cos(angles)[:, : D // 2])

    grid = (B, S_pad // TS)

    # Memory-bound cost: table read once + ids + PE + output.
    cost = pl.CostEstimate(
        flops=2 * B * S_pad * D,                                   # just the PE add
        transcendentals=0,
        bytes_accessed=int(Vp * D * itemsize + S_pad * D * 4
                           + B * S_pad * D * itemsize + B * S_pad * 4),
    )

    # VMEM: 1x resident table (un-pipelined) + double-buffered tiles + slack,
    # clamped against physical per-core capacity (64 MiB on v7x).
    try:
        vmem_cap = int(pltpu.get_tpu_info().vmem_capacity_bytes)
    except Exception:
        vmem_cap = 64 << 20
    vmem_need = (Vp * D * itemsize                 # table, single copy
                 + 2 * TS * D * 4                  # PE tiles (f32, double-buffered)
                 + 2 * TS * D * itemsize           # output tiles
                 + 2 * TS * 4                      # ids tiles
                 + (2 << 20))                      # slack
    vmem_limit = int(min(max(vmem_need, 16 << 20), vmem_cap - (8 << 20)))
    # TODO(synk): for vocabularies whose table exceeds the per-core VMEM budget
    # (esp. v7x, 64 MiB), keep the table in HBM (memory_space=pl.ANY), prefetch ids
    # into SMEM (num_scalar_prefetch=1) and DMA-row-gather into a double-buffered
    # (TS, D) VMEM scratch overlapped with the previous tile's add+store (P4).

    def run(kernel_fn):
        return pl.pallas_call(
            kernel_fn,
            out_shape=jax.ShapeDtypeStruct((B, S_pad, D), dtype),
            grid_spec=pltpu.PrefetchScalarGridSpec(
                num_scalar_prefetch=0,
                grid=grid,
                in_specs=[
                    pl.BlockSpec((None, TS, 1), lambda b, s: (b, s, 0)),   # token ids
                    pl.BlockSpec((TS, D), lambda b, s: (s, 0)),            # PE (seq only)
                    pl.BlockSpec(memory_space=pltpu.MemorySpace.VMEM),     # table, 1x resident
                ],
                out_specs=pl.BlockSpec((None, TS, D), lambda b, s: (b, s, 0)),
            ),
            compiler_params=pltpu.CompilerParams(
                dimension_semantics=("parallel", "parallel"),
                vmem_limit_bytes=vmem_limit,
            ),
            cost_estimate=cost,
        )(ids_col, pe, emb_pad)

    try:
        out = jax.block_until_ready(run(_gather_kernel))
    except Exception:
        # TODO(synk): drop once the jnp.take (dynamic gather) lowering is universal.
        out = run(_onehot_kernel)

    return out[:, :S, :]


if __name__ == "__main__":
    # Small shapes consistent with the module: batch=2, seq=8, vocab=50, embed=128
    B, S, V, D = 2, 8, 50, 128

    key = jax.random.PRNGKey(0)
    k_emb, k_ids = jax.random.split(key)

    emb_table = jax.random.normal(k_emb, (V, D), dtype=jnp.float32)
    ids = jax.random.randint(k_ids, (B, S), 0, V, dtype=jnp.int32)

    out = jax.block_until_ready(token_and_position_embedding(ids, emb_table))

    # --- pure-JAX reference (mirrors the PyTorch forward) ---
    position = jnp.arange(S, dtype=jnp.float32)[:, None]
    div_term = jnp.exp(
        jnp.arange(0, D, 2, dtype=jnp.float32) * (-np.log(10000.0) / D)
    )
    pe = jnp.zeros((S, D), dtype=jnp.float32)
    pe = pe.at[:, 0::2].set(jnp.sin(position * div_term))
    pe = pe.at[:, 1::2].set(jnp.cos(position * div_term))
    ref = emb_table[ids] + pe[None, :, :]

    np.testing.assert_allclose(np.asarray(out), np.asarray(ref), rtol=1e-5, atol=1e-5)
    print("KERNEL_OK")
</pallas_src>

<mosaic_0001>
module attributes {stable_mosaic.version = 11 : i64} {
  func.func @_onehot_kernel(%arg0: i32, %arg1: i32, %arg2: memref<1x8x1xi32, #tpu.memory_space<vmem>>, %arg3: memref<8x128xf32, #tpu.memory_space<vmem>>, %arg4: memref<56x128xf32, #tpu.memory_space<vmem>>, %arg5: memref<1x8x128xf32, #tpu.memory_space<vmem>>) attributes {dimension_semantics = [#tpu.dimension_semantics<parallel>, #tpu.dimension_semantics<parallel>], iteration_bounds = array<i64: 2, 1>, scalar_prefetch = 0 : i64, scratch_operands = 0 : i64, tpu.core_type = #tpu.core_type<tc>, window_params = [{transform_indices = @transform_0, window_bounds = array<i64: 1, 8, 1>}, {transform_indices = @transform_1, window_bounds = array<i64: 8, 128>}, {pipeline_mode = #tpu.pipeline_mode<synchronous>, transform_indices = @transform_2, window_bounds = array<i64: 56, 128>}, {transform_indices = @transform_3, window_bounds = array<i64: 1, 8, 128>}]} {
    %c0 = arith.constant 0 : index
    %c0_0 = arith.constant 0 : index
    %c0_1 = arith.constant 0 : index
    %0 = vector.load %arg2[%c0, %c0_0, %c0_1] : memref<1x8x1xi32, #tpu.memory_space<vmem>>, vector<1x8x1xi32>
    %1 = vector.shape_cast %0 : vector<1x8x1xi32> to vector<8x1xi32>
    %2 = tpu.iota {dimensions = array<i32: 1>} : vector<8x56xi32>
    %3 = vector.broadcast %1 : vector<8x1xi32> to vector<8x56xi32>
    %4 = arith.cmpi eq, %2, %3 : vector<8x56xi32>
    %5 = arith.extui %4 : vector<8x56xi1> to vector<8x56xi32>
    %6 = arith.sitofp %5 : vector<8x56xi32> to vector<8x56xf32>
    %c0_2 = arith.constant 0 : index
    %c0_3 = arith.constant 0 : index
    %7 = vector.load %arg4[%c0_2, %c0_3] : memref<56x128xf32, #tpu.memory_space<vmem>>, vector<56x128xf32>
    %cst = arith.constant dense<0.000000e+00> : vector<8x128xf32>
    %8 = tpu.matmul %6, %7, %cst {dimension_numbers = #tpu.dot_dimension_numbers<[1], [0], [0], [1], [0, 0, 1, 1], [], []>} : vector<8x56xf32>, vector<56x128xf32>, vector<8x128xf32> -> vector<8x128xf32>
    %c0_4 = arith.constant 0 : index
    %c0_5 = arith.constant 0 : index
    %9 = vector.load %arg3[%c0_4, %c0_5] : memref<8x128xf32, #tpu.memory_space<vmem>>, vector<8x128xf32>
    %10 = arith.addf %8, %9 : vector<8x128xf32>
    %c0_6 = arith.constant 0 : index
    %c0_7 = arith.constant 0 : index
    %c0_8 = arith.constant 0 : index
    %11 = vector.load %arg5[%c0_6, %c0_7, %c0_8] : memref<1x8x128xf32, #tpu.memory_space<vmem>>, vector<1x8x128xf32>
    %12 = vector.shape_cast %11 : vector<1x8x128xf32> to vector<8x128xf32>
    %13 = vector.shape_cast %10 : vector<8x128xf32> to vector<1x8x128xf32>
    tpu.vector_store %arg5[%c0_6, %c0_7, %c0_8], %13 {strides = array<i32>} : memref<1x8x128xf32, #tpu.memory_space<vmem>>, vector<1x8x128xf32>,
    return
  }
  func.func @transform_0(%arg0: i32, %arg1: i32) -> (i32, i32, i32) {
    %c0_i32 = arith.constant 0 : i32
    %c0_i32_0 = arith.constant 0 : i32
    return %arg0, %arg1, %c0_i32 : i32, i32, i32
  }
  func.func @transform_1(%arg0: i32, %arg1: i32) -> (i32, i32) {
    %c0_i32 = arith.constant 0 : i32
    %c0_i32_0 = arith.constant 0 : i32
    return %arg1, %c0_i32 : i32, i32
  }
  func.func @transform_2(%arg0: i32, %arg1: i32) -> (i32, i32) {
    %c0_i32 = arith.constant 0 : i32
    %c0_i32_0 = arith.constant 0 : i32
    %c0_i32_1 = arith.constant 0 : i32
    return %c0_i32, %c0_i32_0 : i32, i32
  }
  func.func @transform_3(%arg0: i32, %arg1: i32) -> (i32, i32, i32) {
    %c0_i32 = arith.constant 0 : i32
    %c0_i32_0 = arith.constant 0 : i32
    return %arg0, %arg1, %c0_i32 : i32, i32, i32
  }
}

</mosaic_0001>

<llo_original>
// kernel: tpu_custom_call.1
$region0: #{tpu_custom_call.1}
  #allocation0 [shape = 'u32[]', space=smem, size = 0x4, offset = 0x4, fixed_abs, tag = 'smem constant byte address 0x4 - core index']
  #allocation1 [shape = 'u32[144,128]{1,0:T(1,128)}', space=vmem, size = 0x12000, scoped, tag = 'internal scratch']
  %s0 = inlined_call_operand.vmem [shape: s32[2,8,1], index: 0, kind: input, shape index: {}]
  %s1 = inlined_call_operand.vmem [shape: f32[8,128], index: 1, kind: input, shape index: {}]
  %s2 = inlined_call_operand.hbm [shape: f32[56,128], index: 2, kind: input, shape index: {}]
  %s3 = inlined_call_operand.hbm [shape: f32[2,8,128], index: 3, kind: output, shape index: {}]
  %s4 = sld [smem:[#allocation0]]
  $region49: #{tpu_custom_call.1} parent=0
    _
  %s6 = ssub.s32 1, %s4
  %s7 = scalar_select 0, %s6, %s4
  $region1: #{tpu_custom_call.1} parent=0
    #allocation2 [shape = 'u8[28672]{0}', space=vmem, size = 0x7000, scoped, tag = 'input window, operand 2, single buffered']
    #allocation3 [shape = 's32[2]{0}', space=sflag, size = 0x8, scoped, tag = 'scoped memory for tpu_custom_call.1']
    #allocation4 [shape = 's32[2]{0}', space=sflag, size = 0x8, scoped, tag = 'scoped memory for tpu_custom_call.1']
    #allocation5 [shape = 'u8[8192]{0}', space=vmem, size = 0x2000, scoped, tag = 'output window, operand 0']
    %8 = vsyncpa [#allocation3], 0
    %9 = vsyncpa [#allocation4], 0
    %s10 = scalar_lea.sflag [#allocation4], 1
    %11 = vsyncpa %s10, 0
    loop: start=0, step=1, limit=4
    $region2: #{tpu_custom_call.1} parent=1 // loop_pre_header
      _
    $region3: #{tpu_custom_call.1} parent=1 // loop_header
      %s13 = sphi 0, %s17
      %p14 = scmp.ge.s32.totalorder %s13, 4
      %s20 = sphi 0, %s32
      %s21 = sphi 0, %s28
      %s22 = sphi 0, %s20
      %s23 = sphi 0, %s21
      %s24 = sphi 0, %s22
      %s25 = sphi 0, %s23
      %s37 = sphi 0, %s39
      %s40 = sphi 0, %s37
      %s41 = sphi 0, %s40
      %s57 = sphi 0, %s41
      %s63 = sphi 0, %s65
      %s66 = sphi 0, %s63
      %s67 = sphi 0, %s66
      %s83 = sphi 0, %s67
      %s87 = sphi 0, %s87
      %s89 = sphi 0, %s87
      %s90 = sphi 0, %s89
      %s104 = sphi 0, %s90
      %s112 = sphi 0, %s114
      %s115 = sphi 0, %s112
      %s116 = sphi 0, %s115
      %s132 = sphi 0, %s116
    $region4: #{tpu_custom_call.1} parent=1 // loop_header_branch
      %16 = sbr.rel (%p14) target = $region8
    $region5: #{tpu_custom_call.1} parent=1 // loop_body
      %s18 = ssub.s32 %s13, 1
      %s19 = ssub.s32 %s13, 2
      %s26 = sadd.s32 1, %s21
      %p27 = scmp.ge.s32.totalorder %s26, 1
      %s28 = scalar_select %p27, 0, %s26
      %s29 = sadd.s32 1, %s20
      %s30 = scalar_select %p27, %s29, %s20
      %p31 = scmp.ge.s32.totalorder %s30, 2
      %s32 = scalar_select %p31, 0, %s30
      %s33 = ssub.s32 %s20, %s32
      %s34 = ssub.s32 %s21, %s28
      %s35 = sor.u32 %s33, %s34
      %p36 = scmp.eq.s32.totalorder %s35, 0
      %s38 = sadd.s32 %s37, 1
      %s39 = scalar_select %p36, %s37, %s38
      %p42 = pneg %p36
      %p43 = scmp.eq.s32.totalorder %s13, 1
      %p44 = por %p42, %p43
      %p45 = scmp.ne.s32.totalorder %s37, %s40
      %p46 = scmp.eq.s32.totalorder %s13, 0
      %p47 = por %p45, %p46
      %p48 = scmp.ne.s32.totalorder %s37, %s40
      %p49 = scmp.eq.s32.totalorder %s18, 1
      %p50 = por %p48, %p49
      %p51 = scmp.ne.s32.totalorder %s40, %s41
      %p52 = scmp.eq.s32.totalorder %s18, 0
      %p53 = por %p51, %p52
      %p54 = scmp.ne.s32.totalorder %s40, %s41
      %p55 = scmp.eq.s32.totalorder %s19, 1
      %p56 = por %p54, %p55
      %p58 = scmp.ne.s32.totalorder %s41, %s57
      %p59 = scmp.eq.s32.totalorder %s19, 0
      %p60 = por %p58, %p59
      %s61 = ssub.s32 %s21, %s28
      %p62 = scmp.eq.s32.totalorder %s61, 0
      %s64 = sadd.s32 %s63, 1
      %s65 = scalar_select %p62, %s63, %s64
      %p68 = pneg %p62
      %p69 = scmp.eq.s32.totalorder %s13, 1
      %p70 = por %p68, %p69
      %p71 = scmp.ne.s32.totalorder %s63, %s66
      %p72 = scmp.eq.s32.totalorder %s13, 0
      %p73 = por %p71, %p72
      %p74 = scmp.ne.s32.totalorder %s63, %s66
      %p75 = scmp.eq.s32.totalorder %s18, 1
      %p76 = por %p74, %p75
      %p77 = scmp.ne.s32.totalorder %s66, %s67
      %p78 = scmp.eq.s32.totalorder %s18, 0
      %p79 = por %p77, %p78
      %p80 = scmp.ne.s32.totalorder %s66, %s67
      %p81 = scmp.eq.s32.totalorder %s19, 1
      %p82 = por %p80, %p81
      %p84 = scmp.ne.s32.totalorder %s67, %s83
      %p85 = scmp.eq.s32.totalorder %s19, 0
      %p86 = por %p84, %p85
      %s88 = sadd.s32 %s87, 1
      %p91 = scmp.eq.s32.totalorder %s13, 1
      %p92 = scmp.ne.s32.totalorder %s87, %s89
      %p93 = scmp.eq.s32.totalorder %s13, 0
      %p94 = por %p92, %p93
      %p95 = scmp.ne.s32.totalorder %s87, %s89
      %p96 = scmp.eq.s32.totalorder %s18, 1
      %p97 = por %p95, %p96
      %p98 = scmp.ne.s32.totalorder %s89, %s90
      %p99 = scmp.eq.s32.totalorder %s18, 0
      %p100 = por %p98, %p99
      %p101 = scmp.ne.s32.totalorder %s89, %s90
      %p102 = scmp.eq.s32.totalorder %s19, 1
      %p103 = por %p101, %p102
      %p105 = scmp.ne.s32.totalorder %s90, %s104
      %p106 = scmp.eq.s32.totalorder %s19, 0
      %p107 = por %p105, %p106
      %s108 = ssub.s32 %s20, %s32
      %s109 = ssub.s32 %s21, %s28
      %s110 = sor.u32 %s108, %s109
      %p111 = scmp.eq.s32.totalorder %s110, 0
      %s113 = sadd.s32 %s112, 1
      %s114 = scalar_select %p111, %s112, %s113
      %p117 = pneg %p111
      %p118 = scmp.eq.s32.totalorder %s13, 1
      %p119 = por %p117, %p118
      %p120 = scmp.ne.s32.totalorder %s112, %s115
      %p121 = scmp.eq.s32.totalorder %s13, 0
      %p122 = por %p120, %p121
      %p123 = scmp.ne.s32.totalorder %s112, %s115
      %p124 = scmp.eq.s32.totalorder %s18, 1
      %p125 = por %p123, %p124
      %p126 = scmp.ne.s32.totalorder %s115, %s116
      %p127 = scmp.eq.s32.totalorder %s18, 0
      %p128 = por %p126, %p127
      %p129 = scmp.ne.s32.totalorder %s115, %s116
      %p130 = scmp.eq.s32.totalorder %s19, 1
      %p131 = por %p129, %p130
      %p133 = scmp.ne.s32.totalorder %s116, %s132
      %p134 = scmp.eq.s32.totalorder %s19, 0
      %p135 = por %p133, %p134
      %p136 = scmp.le.s32.totalorder 1, %s13
      %p137 = scmp.lt.s32.totalorder %s13, 3
      %p138 = pnand %p136, %p137
      %p139 = pneg %p138
      // Predicated region
      $region9: #{tpu_custom_call.1} parent=5 // pred_check
        _
      $region10: #{tpu_custom_call.1} parent=5 // pred_check_branch
        %141 = sbr.rel (%p138) target = $region12
      $region11: #{tpu_custom_call.1} parent=5 // pred_region
        %s142 = ssub.s32 %s13, 1
        // Predicated region
        $region13: #{tpu_custom_call.1} parent=11 // pred_check
          %p143 = pneg %p79
        $region14: #{tpu_custom_call.1} parent=11 // pred_check_branch
          %145 = sbr.rel (%p143) target = $region16
        $region15: #{tpu_custom_call.1} parent=11 // pred_region
          %p146 = scmp.lt.s32.totalorder %s23, 0
          %s147 = scalar_select %p146, %s23, 0
          %s148 = smul.addr %s147, 8
          %s149 = scalar_lea.vmem %s1, %s148
        $region16: #{tpu_custom_call.1} parent=11 // pred_fallthru
          _
        // Predicated region
        $region17: #{tpu_custom_call.1} parent=11 // pred_check
          %p150 = pneg %p100
        $region18: #{tpu_custom_call.1} parent=11 // pred_check_branch
          %152 = sbr.rel (%p150) target = $region20
        $region19: #{tpu_custom_call.1} parent=11 // pred_region
          %s154 = ssub.s32 896, 896
          %155 = vsyncadd [#allocation3], %s154
          %s156 = sshll.u32 [#allocation2], 4
          %s157 = int_to_ptr.vmem [resolvable:$true] %s156
          %162 = dma.hbm_to_vmem [thread:$0]  %s2, 896, %s157, [#allocation3], 128, 128, 8
        $region20: #{tpu_custom_call.1} parent=11 // pred_fallthru
          _
      $region12: #{tpu_custom_call.1} parent=5 // pred_fallthru
        _
      %p163 = scmp.lt.s32.totalorder %s13, 2
      // Predicated region
      $region21: #{tpu_custom_call.1} parent=5 // pred_check
        %p164 = pneg %p163
      $region22: #{tpu_custom_call.1} parent=5 // pred_check_branch
        %166 = sbr.rel (%p164) target = $region24
      $region23: #{tpu_custom_call.1} parent=5 // pred_region
        // Predicated region
        $region25: #{tpu_custom_call.1} parent=23 // pred_check
          %p167 = pneg %p47
        $region26: #{tpu_custom_call.1} parent=23 // pred_check_branch
          %169 = sbr.rel (%p167) target = $region28
        $region27: #{tpu_custom_call.1} parent=23 // pred_region
          %p170 = scmp.lt.s32.totalorder %s20, 1
          %s171 = scalar_select %p170, %s20, 1
          %p172 = scmp.lt.s32.totalorder %s21, 0
          %s173 = scalar_select %p172, %s21, 0
          %s174 = sadd.s32 %s173, %s171
          %s175 = smul.addr %s174, 8
          %s176 = scalar_lea.vmem %s0, %s175
        $region28: #{tpu_custom_call.1} parent=23 // pred_fallthru
          _
      $region24: #{tpu_custom_call.1} parent=5 // pred_fallthru
        _
      %p177 = scmp.le.s32.totalorder 1, %s13
      %p178 = scmp.lt.s32.totalorder %s13, 3
      %p179 = pnand %p177, %p178
      %p180 = pneg %p179
      // Predicated region
      $region29: #{tpu_custom_call.1} parent=5 // pred_check
        _
      $region30: #{tpu_custom_call.1} parent=5 // pred_check_branch
        %182 = sbr.rel (%p179) target = $region32
      $region31: #{tpu_custom_call.1} parent=5 // pred_region
        %s183 = ssub.s32 %s13, 1
        // Predicated region
        $region33: #{tpu_custom_call.1} parent=31 // pred_check
          %p184 = pneg %p100
        $region34: #{tpu_custom_call.1} parent=31 // pred_check_branch
          %186 = sbr.rel (%p184) target = $region36
        $region35: #{tpu_custom_call.1} parent=31 // pred_region
          %187 = dma.done [#allocation3], 896
        $region36: #{tpu_custom_call.1} parent=31 // pred_fallthru
          _
        %p188 = scmp.lt.s32.totalorder %s22, 1
        %s189 = scalar_select %p188, %s22, 1
        %p190 = scmp.lt.s32.totalorder %s23, 0
        %s191 = scalar_select %p190, %s23, 0
        %s192 = sadd.s32 %s191, %s189
        %s193 = smul.addr %s192, 8
        %s194 = scalar_lea.vmem %s0, %s193
        %p195 = pneg %p53
        %p196 = pneg %p50
        %p197 = scmp.lt.s32.totalorder %s23, 0
        %s198 = scalar_select %p197, %s23, 0
        %s199 = smul.addr %s198, 8
        %s200 = scalar_lea.vmem %s1, %s199
        %p201 = pneg %p79
        %p202 = pneg %p76
        %p203 = pneg %p100
        %p204 = pneg %p97
        %p205 = pneg %p128
        %p206 = pneg %p125
        %s207 = sand.u32 %s115, 1
        %s208 = scalar_lea.sflag [#allocation4], %s207
        %s209 = sand.u32 %s115, 1
        %s210 = smul.addr %s209, 8
        %s211 = scalar_lea.vmem [#allocation5], %s210
        %p212 = scmp.lt.s32.totalorder %s22, 1
        %s213 = scalar_select %p212, %s22, 1
        %p214 = scmp.lt.s32.totalorder %s23, 0
        %s215 = scalar_select %p214, %s23, 0
        %s216 = sadd.s32 %s215, %s213
        %s217 = smul.addr %s216, 8
        %s218 = scalar_lea.vmem %s0, %s217
        %p219 = scmp.lt.s32.totalorder %s23, 0
        %s220 = scalar_select %p219, %s23, 0
        %s221 = smul.addr %s220, 8
        %s222 = scalar_lea.vmem %s1, %s221
        %v223 = vld [vmem:[%s218] sm:$0xff]
        %v224 = vlaneseq
        %v225 = vand.u32 %v224, 127
        %226 = vset.pattern.permute.xlu0 0
        %227 = vperm.xlu0 %226, %v223
        %v228 = vpop.permute.xlu0 %227
        %vm229 = vcmp.eq.s32.totalorder %v225, %v228
        %v230 = vsel %vm229, 1, 0
        %v231 = vcvt.s32.f32 %v230
        %v232 = vld [vmem:[#allocation2] sm:$0xff]
        %v233 = vld [vmem:[#allocation2 + $0x8] sm:$0xff]
        %v234 = vld [vmem:[#allocation2 + $0x10] sm:$0xff]
        %v235 = vld [vmem:[#allocation2 + $0x18] sm:$0xff]
        %v236 = vld [vmem:[#allocation2 + $0x20] sm:$0xff]
        %v237 = vld [vmem:[#allocation2 + $0x28] sm:$0xff]
        %v238 = vld [vmem:[#allocation2 + $0x30] sm:$0xff]
        %v239 = vld [vmem:[%s222] sm:$0xff]
        %vm240 = vcmask 457728
        %v242 = vsel %vm240, %v231, 0
        %244 = vmatprep.subr.mxu0 0.0
        %245 = vmatpush1.msra.mxu0 %v232
        %246 = vmatprep.subr.mxu0 0.0
        %247 = vmatpush1.msra.mxu0 %v233
        %248 = vmatprep.subr.mxu0 0.0
        %249 = vmatpush1.msra.mxu0 %v234
        %250 = vmatprep.subr.mxu0 0.0
        %251 = vmatpush1.msra.mxu0 %v235
        %252 = vmatprep.subr.mxu0 0.0
        %253 = vmatpush1.msra.mxu0 %v236
        %254 = vmatprep.subr.mxu0 0.0
        %255 = vmatpush1.msra.mxu0 %v237
        %256 = vmatprep.subr.mxu0 0.0
        %257 = vmatpush1.msra.mxu0 %v238
        %258 = vmatprep.subr.mxu0 0.0
        %259 = vmatpush1.msra.mxu0 0.0
        %260 = vmatprep.subr.mxu0 0.0
        %261 = vmatpush1.msra.mxu0 0.0
        %262 = vmatprep.subr.mxu0 0.0
        %263 = vmatpush1.msra.mxu0 0.0
        %264 = vmatprep.subr.mxu0 0.0
        %265 = vmatpush1.msra.mxu0 0.0
        %266 = vmatprep.subr.mxu0 0.0
        %267 = vmatpush1.msra.mxu0 0.0
        %268 = vmatprep.subr.mxu0 0.0
        %269 = vmatpush1.msra.mxu0 0.0
        %270 = vmatprep.subr.mxu0 0.0
        %271 = vmatpush1.msra.mxu0 0.0
        %272 = vmatprep.subr.mxu0 0.0
        %273 = vmatpush1.msra.mxu0 0.0
        %274 = vmatprep.subr.mxu0 0.0
        %275 = vmatpush1.msra.mxu0 0.0
        %276 = vmatprep.subr.mxu0 0.0
        %277 = vmatpush1.msra.mxu0 0.0
        %278 = vmatprep.subr.mxu0 0.0
        %279 = vmatpush1.msra.mxu0 0.0
        %280 = vmatprep.subr.mxu0 0.0
        %281 = vmatpush1.msra.mxu0 0.0
        %282 = vmatprep.subr.mxu0 0.0
        %283 = vmatpush1.msra.mxu0 0.0
        %284 = vmatprep.subr.mxu0 0.0
        %285 = vmatpush1.msra.mxu0 0.0
        %286 = vmatprep.subr.mxu0 0.0
        %287 = vmatpush1.msra.mxu0 0.0
        %288 = vmatprep.subr.mxu0 0.0
        %289 = vmatpush1.msra.mxu0 0.0
        %290 = vmatprep.subr.mxu0 0.0
        %291 = vmatpush1.msra.mxu0 0.0
        %292 = vmatprep.subr.mxu0 0.0
        %293 = vmatpush1.msra.mxu0 0.0
        %294 = vmatprep.subr.mxu0 0.0
        %295 = vmatpush1.msra.mxu0 0.0
        %296 = vmatprep.subr.mxu0 0.0
        %297 = vmatpush1.msra.mxu0 0.0
        %298 = vmatprep.subr.mxu0 0.0
        %299 = vmatpush1.msra.mxu0 0.0
        %300 = vmatprep.subr.mxu0 0.0
        %301 = vmatpush1.msra.mxu0 0.0
        %302 = vmatprep.subr.mxu0 0.0
        %303 = vmatpush1.msra.mxu0 0.0
        %304 = vmatprep.subr.mxu0 0.0
        %305 = vmatpush1.msra.mxu0 0.0
        %306 = vmatprep.subr.mxu0 0.0
        %307 = vmatpush1.msra.mxu0 0.0
        %308 = vmatprep.mubr.f32.mxu0 0.0
        %309 = vmatmul.mubr.f32.gmra.mrb[0].mxu0 %v242
        %v310 = vpop.f32.mrb[0].mxu0
        %v311 = vadd.f32 %v239, %v310
        %v312 = vpop.f32.mrb[0].mxu0
        %313 = vdwg.mxu0
        %314 = vst [vmem:[%s211] sm:$0xff] %v311
        %s315 = sand.u32 %s115, 1
        %s316 = scalar_lea.sflag [#allocation4], %s315
        %s317 = sand.u32 %s115, 1
        %s318 = smul.addr %s317, 8
        %s319 = scalar_lea.vmem [#allocation5], %s318
        // Predicated region
        $region37: #{tpu_custom_call.1} parent=31 // pred_check
          %p320 = pneg %p125
        $region38: #{tpu_custom_call.1} parent=31 // pred_check_branch
          %322 = sbr.rel (%p320) target = $region40
        $region39: #{tpu_custom_call.1} parent=31 // pred_region
          %s324 = ssub.s32 128, 128
          %325 = vsyncadd %s316, %s324
          %s326 = sadd.s32 %s23, %s22
          %s327 = smul.addr %s326, 128
          %s328 = scalar_lea.hbm %s3, %s327
          %s330 = sshll.u32 %s319, 4
          %s331 = int_to_ptr.vmem [resolvable:$true] %s330
          %333 = dma.vmem_to_hbm [thread:$0]  %s331, 128, %s328, %s316
        $region40: #{tpu_custom_call.1} parent=31 // pred_fallthru
          _
      $region32: #{tpu_custom_call.1} parent=5 // pred_fallthru
        _
      %p334 = scmp.le.s32.totalorder 2, %s13
      // Predicated region
      $region41: #{tpu_custom_call.1} parent=5 // pred_check
        %p335 = pneg %p334
      $region42: #{tpu_custom_call.1} parent=5 // pred_check_branch
        %337 = sbr.rel (%p335) target = $region44
      $region43: #{tpu_custom_call.1} parent=5 // pred_region
        %s338 = ssub.s32 %s13, 2
        // Predicated region
        $region45: #{tpu_custom_call.1} parent=43 // pred_check
          %p339 = pneg %p131
        $region46: #{tpu_custom_call.1} parent=43 // pred_check_branch
          %341 = sbr.rel (%p339) target = $region48
        $region47: #{tpu_custom_call.1} parent=43 // pred_region
          %s342 = sand.u32 %s116, 1
          %s343 = scalar_lea.sflag [#allocation4], %s342
          %s344 = sand.u32 %s116, 1
          %s345 = smul.addr %s344, 8
          %s346 = scalar_lea.vmem [#allocation5], %s345
          %347 = dma.done %s343, 128
        $region48: #{tpu_custom_call.1} parent=43 // pred_fallthru
          _
      $region44: #{tpu_custom_call.1} parent=5 // pred_fallthru
        _
    $region6: #{tpu_custom_call.1} parent=1 // loop_footer
      %s17 = sadd.s32 1, %s13
    $region7: #{tpu_custom_call.1} parent=1 // loop_footer_branch
      %12 = sbr.rel target = $region3
    $region8: #{tpu_custom_call.1} parent=1 // loop_exit
      _
    %348 = vsyncpa [#allocation3], 1
    %s349 = scalar_lea.sflag [#allocation3], 1
    %350 = vsyncpa %s349, 1
    %351 = vsyncpa [#allocation4], 1
    %s352 = scalar_lea.sflag [#allocation4], 1
    %353 = vsyncpa %s352, 1

</llo_original>
